<compile_context>
chip_gen: v7x
topology: tpu7x:2x2x1
jax: 0.10.0
libtpu: 0.0.40
codegen_flags: <defaults>
</compile_context>

<pallas_src>
import functools

import jax
import jax.numpy as jnp
from jax.experimental import pallas as pl
from jax.experimental.pallas import tpu as pltpu

LANE = 128


def _round_up(x, m):
    return (x + m - 1) // m * m


def conv_stats_kernel(x_ref, w_ref, conv_ref, stats_ref):
    """Pass 1: tile matmul conv + per-channel partial sum / sum-of-squares.

    x_ref:     (TM, Kp)     im2col slab tile (input dtype)
    w_ref:     (Kp, Coutp)  reshaped conv weights (resident across the grid)
    conv_ref:  (TM, Coutp)  f32 conv output tile
    stats_ref: (2, Coutp)   f32 [sum; sum_sq], resident across the inner axis
    """
    t = pl.program_id(1)

    @pl.when(t == 0)
    def _init():
        stats_ref[...] = jnp.zeros_like(stats_ref)

    acc = jnp.dot(x_ref[...], w_ref[...], preferred_element_type=jnp.float32)
    conv_ref[...] = acc

    s = jnp.sum(acc, axis=0, keepdims=True)           # (1, Coutp)
    sq = jnp.sum(acc * acc, axis=0, keepdims=True)    # (1, Coutp)
    stats_ref[...] += jnp.concatenate([s, sq], axis=0)


def bn_relu_kernel(conv_ref, stats_ref, gamma_ref, beta_ref, o_ref, *,
                   inv_count, eps):
    """Pass 2: BatchNorm (training-mode global stats) + affine + ReLU."""
    mean = stats_ref[0:1, :] * inv_count                              # (1, Coutp)
    var = jnp.maximum(stats_ref[1:2, :] * inv_count - mean * mean, 0.0)
    inv = jax.lax.rsqrt(var + eps)
    scale = gamma_ref[...] * inv                                      # (1, Coutp)
    shift = beta_ref[...] - mean * scale
    y = conv_ref[...] * scale + shift
    o_ref[...] = jnp.maximum(y, 0.0).astype(o_ref.dtype)


def conv_layer_forward(x_nchw, weight_oihw, gamma, beta, *,
                       stride=1, padding=0, eps=1e-5, row_tile=512):
    """Pallas implementation of ConvLayer.forward (groups=1, IN=False)."""
    n, cin, h, w = x_nchw.shape
    cout, cin_w, kh, kw = weight_oihw.shape
    assert cin == cin_w, "only groups=1 is implemented"
    assert row_tile % 8 == 0

    h_out = (h + 2 * padding - kh) // stride + 1
    w_out = (w + 2 * padding - kw) // stride + 1
    rows = n * h_out * w_out

    k = kh * kw * cin
    kp = _round_up(k, LANE)
    coutp = _round_up(cout, LANE)

    # ---- glue: layout transforms + im2col (pure XLA, outside the kernels) ----
    x_nhwc = jnp.transpose(x_nchw, (0, 2, 3, 1))
    x_pad = jnp.pad(x_nhwc, ((0, 0), (padding, padding),
                             (padding, padding), (0, 0)))
    taps = []
    for ih in range(kh):
        for iw in range(kw):
            taps.append(x_pad[:,
                              ih:ih + (h_out - 1) * stride + 1:stride,
                              iw:iw + (w_out - 1) * stride + 1:stride,
                              :])
    patches = jnp.concatenate(taps, axis=-1).reshape(rows, k)

    n_tiles = -(-rows // row_tile)
    npar = 2 if n_tiles >= 2 else 1          # shard outer axis across 2 TCs (v7x)
    tpp = -(-n_tiles // npar)
    rows_p = npar * tpp * row_tile

    # Zero-padded rows/columns contribute exactly 0 to conv, sum and sum_sq,
    # so global BN statistics (divided by the true `rows`) remain exact.
    x_slab = jnp.pad(patches, ((0, rows_p - rows), (0, kp - k)))
    w_hwio = jnp.transpose(weight_oihw, (2, 3, 1, 0)).reshape(k, cout)
    w_slab = jnp.pad(w_hwio, ((0, kp - k), (0, coutp - cout))).astype(x_slab.dtype)
    gamma2 = jnp.pad(gamma.astype(jnp.float32).reshape(1, cout),
                     ((0, 0), (0, coutp - cout)))
    beta2 = jnp.pad(beta.astype(jnp.float32).reshape(1, cout),
                    ((0, 0), (0, coutp - cout)))

    vmem_limit = 32 * 1024 * 1024

    # ---- Pass 1: conv tiles + per-channel partial statistics ----
    conv_out, stats = pl.pallas_call(
        conv_stats_kernel,
        grid=(npar, tpp),
        in_specs=[
            pl.BlockSpec((row_tile, kp), lambda p, t: (p * tpp + t, 0)),
            pl.BlockSpec((kp, coutp), lambda p, t: (0, 0)),
        ],
        out_specs=(
            pl.BlockSpec((row_tile, coutp), lambda p, t: (p * tpp + t, 0)),
            pl.BlockSpec((None, 2, coutp), lambda p, t: (p, 0, 0)),
        ),
        out_shape=(
            jax.ShapeDtypeStruct((rows_p, coutp), jnp.float32),
            jax.ShapeDtypeStruct((npar, 2, coutp), jnp.float32),
        ),
        compiler_params=pltpu.CompilerParams(
            dimension_semantics=("parallel", "arbitrary"),
            vmem_limit_bytes=vmem_limit),
    )(x_slab, w_slab)

    stats_total = jnp.sum(stats, axis=0)     # (2, Coutp) — tiny reduce

    # ---- Pass 2: normalize + affine + ReLU ----
    kernel2 = functools.partial(bn_relu_kernel,
                                inv_count=1.0 / float(rows), eps=float(eps))
    out_slab = pl.pallas_call(
        kernel2,
        grid=(npar * tpp,),
        in_specs=[
            pl.BlockSpec((row_tile, coutp), lambda i: (i, 0)),
            pl.BlockSpec((2, coutp), lambda i: (0, 0)),
            pl.BlockSpec((1, coutp), lambda i: (0, 0)),
            pl.BlockSpec((1, coutp), lambda i: (0, 0)),
        ],
        out_specs=pl.BlockSpec((row_tile, coutp), lambda i: (i, 0)),
        out_shape=jax.ShapeDtypeStruct((rows_p, coutp), x_nchw.dtype),
        compiler_params=pltpu.CompilerParams(
            dimension_semantics=("parallel",),
            vmem_limit_bytes=vmem_limit),
    )(conv_out, stats_total, gamma2, beta2)

    out = out_slab[:rows, :cout].reshape(n, h_out, w_out, cout)
    return jnp.transpose(out, (0, 3, 1, 2))   # NHWC -> NCHW


def _reference_forward(x_nchw, weight_oihw, gamma, beta, *, stride, padding, eps):
    """Pure-JAX reference mirroring the PyTorch forward (training-mode BN)."""
    conv = jax.lax.conv_general_dilated(
        x_nchw.astype(jnp.float32), weight_oihw.astype(jnp.float32),
        window_strides=(stride, stride),
        padding=((padding, padding), (padding, padding)),
        dimension_numbers=("NCHW", "OIHW", "NCHW"))
    mean = jnp.mean(conv, axis=(0, 2, 3), keepdims=True)
    var = jnp.mean((conv - mean) ** 2, axis=(0, 2, 3), keepdims=True)
    y = (conv - mean) * jax.lax.rsqrt(var + eps)
    y = y * gamma.reshape(1, -1, 1, 1) + beta.reshape(1, -1, 1, 1)
    return jnp.maximum(y, 0.0)


if __name__ == "__main__":
    # ConvLayer(in_channels=4, out_channels=8, kernel_size=3, stride=1, padding=1)
    N, Cin, H, W = 2, 4, 16, 16
    Cout, K = 8, 3
    stride, padding = 1, 1

    key = jax.random.PRNGKey(0)
    kx, kw_, kg, kb = jax.random.split(key, 4)
    x = jax.random.normal(kx, (N, Cin, H, W), dtype=jnp.float32)
    weight = jax.random.normal(kw_, (Cout, Cin, K, K), dtype=jnp.float32) * 0.1
    gamma = 1.0 + 0.1 * jax.random.normal(kg, (Cout,), dtype=jnp.float32)
    beta = 0.1 * jax.random.normal(kb, (Cout,), dtype=jnp.float32)

    # Small row_tile at this toy shape to exercise the parallel axis and the
    # cross-tile statistics accumulation (4 row tiles -> grid (2, 2)).
    fwd = jax.jit(functools.partial(conv_layer_forward, stride=stride,
                                    padding=padding, eps=1e-5, row_tile=128))
    out = jax.block_until_ready(fwd(x, weight, gamma, beta))

    ref = _reference_forward(x, weight, gamma, beta,
                             stride=stride, padding=padding, eps=1e-5)
    assert out.shape == (N, Cout, H, W)
    err = float(jnp.max(jnp.abs(out - ref)))
    assert err < 5e-4, f"max abs err {err}"
    print("KERNEL_OK")
</pallas_src>

<mosaic_0001>
module attributes {stable_mosaic.version = 11 : i64} {
  func.func @conv_stats_kernel(%arg0: i32, %arg1: i32, %arg2: memref<128x128xf32, #tpu.memory_space<vmem>>, %arg3: memref<128x128xf32, #tpu.memory_space<vmem>>, %arg4: memref<128x128xf32, #tpu.memory_space<vmem>>, %arg5: memref<1x2x128xf32, #tpu.memory_space<vmem>>) attributes {dimension_semantics = [#tpu.dimension_semantics<parallel>, #tpu.dimension_semantics<arbitrary>], iteration_bounds = array<i64: 2, 2>, scalar_prefetch = 0 : i64, scratch_operands = 0 : i64, tpu.core_type = #tpu.core_type<tc>, window_params = [{transform_indices = @transform_0, window_bounds = array<i64: 128, 128>}, {pipeline_mode = #tpu.pipeline_mode<synchronous>, transform_indices = @transform_1, window_bounds = array<i64: 128, 128>}, {transform_indices = @transform_2, window_bounds = array<i64: 128, 128>}, {transform_indices = @transform_3, window_bounds = array<i64: 1, 2, 128>}]} {
    %c0_i32 = arith.constant 0 : i32
    %0 = arith.cmpi eq, %arg1, %c0_i32 : i32
    %1 = arith.extui %0 : i1 to i32
    %c0_i32_0 = arith.constant 0 : i32
    %2 = arith.cmpi ne, %1, %c0_i32_0 : i32
    scf.if %2 {
      %cst_14 = arith.constant 0.000000e+00 : f32
      %19 = vector.broadcast %cst_14 : f32 to vector<2x128xf32>
      %c0_15 = arith.constant 0 : index
      %c0_16 = arith.constant 0 : index
      %c0_17 = arith.constant 0 : index
      %20 = vector.load %arg5[%c0_15, %c0_16, %c0_17] : memref<1x2x128xf32, #tpu.memory_space<vmem>>, vector<1x2x128xf32>
      %21 = vector.shape_cast %20 : vector<1x2x128xf32> to vector<2x128xf32>
      %22 = vector.shape_cast %19 : vector<2x128xf32> to vector<1x2x128xf32>
      tpu.vector_store %arg5[%c0_15, %c0_16, %c0_17], %22 {strides = array<i32>} : memref<1x2x128xf32, #tpu.memory_space<vmem>>, vector<1x2x128xf32>,
    } else {
    }
    %c0 = arith.constant 0 : index
    %c0_1 = arith.constant 0 : index
    %3 = vector.load %arg2[%c0, %c0_1] : memref<128x128xf32, #tpu.memory_space<vmem>>, vector<128x128xf32>
    %c0_2 = arith.constant 0 : index
    %c0_3 = arith.constant 0 : index
    %4 = vector.load %arg3[%c0_2, %c0_3] : memref<128x128xf32, #tpu.memory_space<vmem>>, vector<128x128xf32>
    %cst = arith.constant dense<0.000000e+00> : vector<128x128xf32>
    %5 = tpu.matmul %3, %4, %cst {dimension_numbers = #tpu.dot_dimension_numbers<[1], [0], [0], [1], [0, 0, 1, 1], [], []>} : vector<128x128xf32>, vector<128x128xf32>, vector<128x128xf32> -> vector<128x128xf32>
    %c0_4 = arith.constant 0 : index
    %c0_5 = arith.constant 0 : index
    %6 = vector.load %arg4[%c0_4, %c0_5] : memref<128x128xf32, #tpu.memory_space<vmem>>, vector<128x128xf32>
    tpu.vector_store %arg4[%c0_4, %c0_5], %5 {strides = array<i32>} : memref<128x128xf32, #tpu.memory_space<vmem>>, vector<128x128xf32>,
    %cst_6 = arith.constant dense<0.000000e+00> : vector<128xf32>
    %7 = vector.multi_reduction <add>, %5, %cst_6 [0] : vector<128x128xf32> to vector<128xf32>
    %8 = vector.shape_cast %7 : vector<128xf32> to vector<1x128xf32>
    %9 = arith.mulf %5, %5 : vector<128x128xf32>
    %cst_7 = arith.constant dense<0.000000e+00> : vector<128xf32>
    %10 = vector.multi_reduction <add>, %9, %cst_7 [0] : vector<128x128xf32> to vector<128xf32>
    %11 = vector.shape_cast %10 : vector<128xf32> to vector<1x128xf32>
    %c0_8 = arith.constant 0 : index
    %c0_9 = arith.constant 0 : index
    %c0_10 = arith.constant 0 : index
    %12 = vector.load %arg5[%c0_8, %c0_9, %c0_10] : memref<1x2x128xf32, #tpu.memory_space<vmem>>, vector<1x2x128xf32>
    %13 = vector.shape_cast %12 : vector<1x2x128xf32> to vector<2x128xf32>
    %14 = tpu.concatenate %8, %11 in 0 : vector<1x128xf32>, vector<1x128xf32> -> vector<2x128xf32>
    %15 = arith.addf %13, %14 : vector<2x128xf32>
    %c0_11 = arith.constant 0 : index
    %c0_12 = arith.constant 0 : index
    %c0_13 = arith.constant 0 : index
    %16 = vector.load %arg5[%c0_11, %c0_12, %c0_13] : memref<1x2x128xf32, #tpu.memory_space<vmem>>, vector<1x2x128xf32>
    %17 = vector.shape_cast %16 : vector<1x2x128xf32> to vector<2x128xf32>
    %18 = vector.shape_cast %15 : vector<2x128xf32> to vector<1x2x128xf32>
    tpu.vector_store %arg5[%c0_11, %c0_12, %c0_13], %18 {strides = array<i32>} : memref<1x2x128xf32, #tpu.memory_space<vmem>>, vector<1x2x128xf32>,
    return
  }
  func.func @transform_0(%arg0: i32, %arg1: i32) -> (i32, i32) {
    %c2_i32 = arith.constant 2 : i32
    %0 = arith.muli %arg0, %c2_i32 : i32
    %1 = arith.addi %0, %arg1 : i32
    %c0_i32 = arith.constant 0 : i32
    %c0_i32_0 = arith.constant 0 : i32
    return %1, %c0_i32 : i32, i32
  }
  func.func @transform_1(%arg0: i32, %arg1: i32) -> (i32, i32) {
    %c0_i32 = arith.constant 0 : i32
    %c0_i32_0 = arith.constant 0 : i32
    %c0_i32_1 = arith.constant 0 : i32
    return %c0_i32, %c0_i32_0 : i32, i32
  }
  func.func @transform_2(%arg0: i32, %arg1: i32) -> (i32, i32) {
    %c2_i32 = arith.constant 2 : i32
    %0 = arith.muli %arg0, %c2_i32 : i32
    %1 = arith.addi %0, %arg1 : i32
    %c0_i32 = arith.constant 0 : i32
    %c0_i32_0 = arith.constant 0 : i32
    return %1, %c0_i32 : i32, i32
  }
  func.func @transform_3(%arg0: i32, %arg1: i32) -> (i32, i32, i32) {
    %c0_i32 = arith.constant 0 : i32
    %c0_i32_0 = arith.constant 0 : i32
    %c0_i32_1 = arith.constant 0 : i32
    return %arg0, %c0_i32, %c0_i32_0 : i32, i32, i32
  }
}

module attributes {stable_mosaic.version = 11 : i64} {
  func.func @bn_relu_kernel(%arg0: i32, %arg1: memref<128x128xf32, #tpu.memory_space<vmem>>, %arg2: memref<2x128xf32, #tpu.memory_space<vmem>>, %arg3: memref<1x128xf32, #tpu.memory_space<vmem>>, %arg4: memref<1x128xf32, #tpu.memory_space<vmem>>, %arg5: memref<128x128xf32, #tpu.memory_space<vmem>>) attributes {dimension_semantics = [#tpu.dimension_semantics<parallel>], iteration_bounds = array<i64: 4>, scalar_prefetch = 0 : i64, scratch_operands = 0 : i64, tpu.core_type = #tpu.core_type<tc>, window_params = [{transform_indices = @transform_0, window_bounds = array<i64: 128, 128>}, {pipeline_mode = #tpu.pipeline_mode<synchronous>, transform_indices = @transform_1, window_bounds = array<i64: 2, 128>}, {pipeline_mode = #tpu.pipeline_mode<synchronous>, transform_indices = @transform_2, window_bounds = array<i64: 1, 128>}, {pipeline_mode = #tpu.pipeline_mode<synchronous>, transform_indices = @transform_3, window_bounds = array<i64: 1, 128>}, {transform_indices = @transform_4, window_bounds = array<i64: 128, 128>}]} {
    %c0 = arith.constant 0 : index
    %c0_0 = arith.constant 0 : index
    %0 = vector.load %arg2[%c0, %c0_0] : memref<2x128xf32, #tpu.memory_space<vmem>>, vector<1x128xf32>
    %cst = arith.constant 0.001953125 : f32
    %1 = vector.broadcast %cst : f32 to vector<1x128xf32>
    %2 = arith.mulf %0, %1 : vector<1x128xf32>
    %c1 = arith.constant 1 : index
    %c0_1 = arith.constant 0 : index
    %3 = vector.load %arg2[%c1, %c0_1] : memref<2x128xf32, #tpu.memory_space<vmem>>, vector<1x128xf32>
    %cst_2 = arith.constant 0.001953125 : f32
    %4 = vector.broadcast %cst_2 : f32 to vector<1x128xf32>
    %5 = arith.mulf %3, %4 : vector<1x128xf32>
    %6 = arith.mulf %2, %2 : vector<1x128xf32>
    %7 = arith.subf %5, %6 : vector<1x128xf32>
    %cst_3 = arith.constant 0.000000e+00 : f32
    %8 = vector.broadcast %cst_3 : f32 to vector<1x128xf32>
    %9 = arith.maximumf %7, %8 : vector<1x128xf32>
    %cst_4 = arith.constant 9.99999974E-6 : f32
    %10 = vector.broadcast %cst_4 : f32 to vector<1x128xf32>
    %11 = arith.addf %9, %10 : vector<1x128xf32>
    %12 = math.rsqrt %11 : vector<1x128xf32>
    %c0_5 = arith.constant 0 : index
    %c0_6 = arith.constant 0 : index
    %13 = vector.load %arg3[%c0_5, %c0_6] : memref<1x128xf32, #tpu.memory_space<vmem>>, vector<1x128xf32>
    %14 = arith.mulf %13, %12 : vector<1x128xf32>
    %c0_7 = arith.constant 0 : index
    %c0_8 = arith.constant 0 : index
    %15 = vector.load %arg4[%c0_7, %c0_8] : memref<1x128xf32, #tpu.memory_space<vmem>>, vector<1x128xf32>
    %16 = arith.mulf %2, %14 : vector<1x128xf32>
    %17 = arith.subf %15, %16 : vector<1x128xf32>
    %c0_9 = arith.constant 0 : index
    %c0_10 = arith.constant 0 : index
    %18 = vector.load %arg1[%c0_9, %c0_10] : memref<128x128xf32, #tpu.memory_space<vmem>>, vector<128x128xf32>
    %19 = vector.broadcast %14 : vector<1x128xf32> to vector<128x128xf32>
    %20 = arith.mulf %18, %19 : vector<128x128xf32>
    %21 = vector.broadcast %17 : vector<1x128xf32> to vector<128x128xf32>
    %22 = arith.addf %20, %21 : vector<128x128xf32>
    %cst_11 = arith.constant 0.000000e+00 : f32
    %23 = vector.broadcast %cst_11 : f32 to vector<128x128xf32>
    %24 = arith.maximumf %22, %23 : vector<128x128xf32>
    %c0_12 = arith.constant 0 : index
    %c0_13 = arith.constant 0 : index
    %25 = vector.load %arg5[%c0_12, %c0_13] : memref<128x128xf32, #tpu.memory_space<vmem>>, vector<128x128xf32>
    tpu.vector_store %arg5[%c0_12, %c0_13], %24 {strides = array<i32>} : memref<128x128xf32, #tpu.memory_space<vmem>>, vector<128x128xf32>,
    return
  }
  func.func @transform_0(%arg0: i32) -> (i32, i32) {
    %c0_i32 = arith.constant 0 : i32
    %c0_i32_0 = arith.constant 0 : i32
    return %arg0, %c0_i32 : i32, i32
  }
  func.func @transform_1(%arg0: i32) -> (i32, i32) {
    %c0_i32 = arith.constant 0 : i32
    %c0_i32_0 = arith.constant 0 : i32
    %c0_i32_1 = arith.constant 0 : i32
    return %c0_i32, %c0_i32_0 : i32, i32
  }
  func.func @transform_2(%arg0: i32) -> (i32, i32) {
    %c0_i32 = arith.constant 0 : i32
    %c0_i32_0 = arith.constant 0 : i32
    %c0_i32_1 = arith.constant 0 : i32
    return %c0_i32, %c0_i32_0 : i32, i32
  }
  func.func @transform_3(%arg0: i32) -> (i32, i32) {
    %c0_i32 = arith.constant 0 : i32
    %c0_i32_0 = arith.constant 0 : i32
    %c0_i32_1 = arith.constant 0 : i32
    return %c0_i32, %c0_i32_0 : i32, i32
  }
  func.func @transform_4(%arg0: i32) -> (i32, i32) {
    %c0_i32 = arith.constant 0 : i32
    %c0_i32_0 = arith.constant 0 : i32
    return %arg0, %c0_i32 : i32, i32
  }
}

</mosaic_0001>

<llo_original>
// kernel: conv_layer_forward.3
$region0: #{conv_layer_forward.3}
  #allocation0 [shape = 'u32[]', space=smem, size = 0x4, offset = 0x4, fixed_abs, tag = 'smem constant byte address 0x4 - core index']
  #allocation1 [shape = 'u32[144,128]{1,0:T(1,128)}', space=vmem, size = 0x12000, scoped, tag = 'internal scratch']
  %s0 = inlined_call_operand.vmem [shape: f32[512,128], index: 0, kind: input, shape index: {}]
  %s1 = inlined_call_operand.vmem [shape: f32[2,128], index: 1, kind: input, shape index: {}]
  %s2 = inlined_call_operand.vmem [shape: f32[1,128], index: 2, kind: input, shape index: {}]
  %s3 = inlined_call_operand.vmem [shape: f32[1,128], index: 3, kind: input, shape index: {}]
  %s4 = inlined_call_operand.vmem [shape: f32[512,128], index: 4, kind: output, shape index: {}]
  %s5 = sld [smem:[#allocation0]]
  $region49: #{conv_layer_forward.3} parent=0
    _
  %s7 = ssub.s32 1, %s5
  %s8 = scalar_select 0, %s7, %s5
  loop: start=0, step=1, limit=6
  $region2: #{conv_layer_forward.3} parent=0 // loop_pre_header
    _
  $region3: #{conv_layer_forward.3} parent=0 // loop_header
    %s10 = sphi 0, %s14
    %p11 = scmp.ge.s32.totalorder %s10, 6
    %s20 = sphi 0, %s22
    %s23 = sphi 0, %s20
    %s24 = sphi 0, %s23
    %s40 = sphi 0, %s24
    %s44 = sphi 0, %s44
    %s46 = sphi 0, %s44
    %s47 = sphi 0, %s46
    %s61 = sphi 0, %s47
    %s65 = sphi 0, %s65
    %s67 = sphi 0, %s65
    %s68 = sphi 0, %s67
    %s82 = sphi 0, %s68
    %s86 = sphi 0, %s86
    %s88 = sphi 0, %s86
    %s89 = sphi 0, %s88
    %s103 = sphi 0, %s89
    %s109 = sphi 0, %s111
    %s112 = sphi 0, %s109
    %s113 = sphi 0, %s112
    %s129 = sphi 0, %s113
  $region4: #{conv_layer_forward.3} parent=0 // loop_header_branch
    %13 = sbr.rel (%p11) target = $region8
  $region5: #{conv_layer_forward.3} parent=0 // loop_body
    %s15 = ssub.s32 %s10, 1
    %s16 = ssub.s32 %s10, 2
    %s17 = sadd.s32 %s10, 1
    %s18 = ssub.s32 %s10, %s17
    %p19 = scmp.eq.s32.totalorder %s18, 0
    %s21 = sadd.s32 %s20, 1
    %s22 = scalar_select %p19, %s20, %s21
    %p25 = pneg %p19
    %p26 = scmp.eq.s32.totalorder %s10, 3
    %p27 = por %p25, %p26
    %p28 = scmp.ne.s32.totalorder %s20, %s23
    %p29 = scmp.eq.s32.totalorder %s10, 0
    %p30 = por %p28, %p29
    %p31 = scmp.ne.s32.totalorder %s20, %s23
    %p32 = scmp.eq.s32.totalorder %s15, 3
    %p33 = por %p31, %p32
    %p34 = scmp.ne.s32.totalorder %s23, %s24
    %p35 = scmp.eq.s32.totalorder %s15, 0
    %p36 = por %p34, %p35
    %p37 = scmp.ne.s32.totalorder %s23, %s24
    %p38 = scmp.eq.s32.totalorder %s16, 3
    %p39 = por %p37, %p38
    %p41 = scmp.ne.s32.totalorder %s24, %s40
    %p42 = scmp.eq.s32.totalorder %s16, 0
    %p43 = por %p41, %p42
    %s45 = sadd.s32 %s44, 1
    %p48 = scmp.eq.s32.totalorder %s10, 3
    %p49 = scmp.ne.s32.totalorder %s44, %s46
    %p50 = scmp.eq.s32.totalorder %s10, 0
    %p51 = por %p49, %p50
    %p52 = scmp.ne.s32.totalorder %s44, %s46
    %p53 = scmp.eq.s32.totalorder %s15, 3
    %p54 = por %p52, %p53
    %p55 = scmp.ne.s32.totalorder %s46, %s47
    %p56 = scmp.eq.s32.totalorder %s15, 0
    %p57 = por %p55, %p56
    %p58 = scmp.ne.s32.totalorder %s46, %s47
    %p59 = scmp.eq.s32.totalorder %s16, 3
    %p60 = por %p58, %p59
    %p62 = scmp.ne.s32.totalorder %s47, %s61
    %p63 = scmp.eq.s32.totalorder %s16, 0
    %p64 = por %p62, %p63
    %s66 = sadd.s32 %s65, 1
    %p69 = scmp.eq.s32.totalorder %s10, 3
    %p70 = scmp.ne.s32.totalorder %s65, %s67
    %p71 = scmp.eq.s32.totalorder %s10, 0
    %p72 = por %p70, %p71
    %p73 = scmp.ne.s32.totalorder %s65, %s67
    %p74 = scmp.eq.s32.totalorder %s15, 3
    %p75 = por %p73, %p74
    %p76 = scmp.ne.s32.totalorder %s67, %s68
    %p77 = scmp.eq.s32.totalorder %s15, 0
    %p78 = por %p76, %p77
    %p79 = scmp.ne.s32.totalorder %s67, %s68
    %p80 = scmp.eq.s32.totalorder %s16, 3
    %p81 = por %p79, %p80
    %p83 = scmp.ne.s32.totalorder %s68, %s82
    %p84 = scmp.eq.s32.totalorder %s16, 0
    %p85 = por %p83, %p84
    %s87 = sadd.s32 %s86, 1
    %p90 = scmp.eq.s32.totalorder %s10, 3
    %p91 = scmp.ne.s32.totalorder %s86, %s88
    %p92 = scmp.eq.s32.totalorder %s10, 0
    %p93 = por %p91, %p92
    %p94 = scmp.ne.s32.totalorder %s86, %s88
    %p95 = scmp.eq.s32.totalorder %s15, 3
    %p96 = por %p94, %p95
    %p97 = scmp.ne.s32.totalorder %s88, %s89
    %p98 = scmp.eq.s32.totalorder %s15, 0
    %p99 = por %p97, %p98
    %p100 = scmp.ne.s32.totalorder %s88, %s89
    %p101 = scmp.eq.s32.totalorder %s16, 3
    %p102 = por %p100, %p101
    %p104 = scmp.ne.s32.totalorder %s89, %s103
    %p105 = scmp.eq.s32.totalorder %s16, 0
    %p106 = por %p104, %p105
    %s107 = ssub.s32 %s10, %s17
    %p108 = scmp.eq.s32.totalorder %s107, 0
    %s110 = sadd.s32 %s109, 1
    %s111 = scalar_select %p108, %s109, %s110
    %p114 = pneg %p108
    %p115 = scmp.eq.s32.totalorder %s10, 3
    %p116 = por %p114, %p115
    %p117 = scmp.ne.s32.totalorder %s109, %s112
    %p118 = scmp.eq.s32.totalorder %s10, 0
    %p119 = por %p117, %p118
    %p120 = scmp.ne.s32.totalorder %s109, %s112
    %p121 = scmp.eq.s32.totalorder %s15, 3
    %p122 = por %p120, %p121
    %p123 = scmp.ne.s32.totalorder %s112, %s113
    %p124 = scmp.eq.s32.totalorder %s15, 0
    %p125 = por %p123, %p124
    %p126 = scmp.ne.s32.totalorder %s112, %s113
    %p127 = scmp.eq.s32.totalorder %s16, 3
    %p128 = por %p126, %p127
    %p130 = scmp.ne.s32.totalorder %s113, %s129
    %p131 = scmp.eq.s32.totalorder %s16, 0
    %p132 = por %p130, %p131
    %p133 = scmp.le.s32.totalorder 1, %s10
    %p134 = scmp.lt.s32.totalorder %s10, 5
    %p135 = pnand %p133, %p134
    %p136 = pneg %p135
    // Predicated region
    $region9: #{conv_layer_forward.3} parent=5 // pred_check
      _
    $region10: #{conv_layer_forward.3} parent=5 // pred_check_branch
      %138 = sbr.rel (%p135) target = $region12
    $region11: #{conv_layer_forward.3} parent=5 // pred_region
      %s139 = ssub.s32 %s10, 1
      // Predicated region
      $region13: #{conv_layer_forward.3} parent=11 // pred_check
        %p140 = pneg %p57
      $region14: #{conv_layer_forward.3} parent=11 // pred_check_branch
        %142 = sbr.rel (%p140) target = $region16
      $region15: #{conv_layer_forward.3} parent=11 // pred_region
        _
      $region16: #{conv_layer_forward.3} parent=11 // pred_fallthru
        _
      // Predicated region
      $region17: #{conv_layer_forward.3} parent=11 // pred_check
        %p143 = pneg %p78
      $region18: #{conv_layer_forward.3} parent=11 // pred_check_branch
        %145 = sbr.rel (%p143) target = $region20
      $region19: #{conv_layer_forward.3} parent=11 // pred_region
        _
      $region20: #{conv_layer_forward.3} parent=11 // pred_fallthru
        _
      // Predicated region
      $region21: #{conv_layer_forward.3} parent=11 // pred_check
        %p146 = pneg %p99
      $region22: #{conv_layer_forward.3} parent=11 // pred_check_branch
        %148 = sbr.rel (%p146) target = $region24
      $region23: #{conv_layer_forward.3} parent=11 // pred_region
        _
      $region24: #{conv_layer_forward.3} parent=11 // pred_fallthru
        _
    $region12: #{conv_layer_forward.3} parent=5 // pred_fallthru
      _
    %p149 = scmp.lt.s32.totalorder %s10, 4
    // Predicated region
    $region25: #{conv_layer_forward.3} parent=5 // pred_check
      %p150 = pneg %p149
    $region26: #{conv_layer_forward.3} parent=5 // pred_check_branch
      %152 = sbr.rel (%p150) target = $region28
    $region27: #{conv_layer_forward.3} parent=5 // pred_region
      // Predicated region
      $region29: #{conv_layer_forward.3} parent=27 // pred_check
        %p153 = pneg %p30
      $region30: #{conv_layer_forward.3} parent=27 // pred_check_branch
        %155 = sbr.rel (%p153) target = $region32
      $region31: #{conv_layer_forward.3} parent=27 // pred_region
        %s156 = smul.u32 16, %s10
        %p157 = scmp.lt.s32.totalorder %s156, 63
        %s158 = scalar_select %p157, %s156, 63
        %s159 = smul.addr %s158, 8
        %s160 = scalar_lea.vmem %s0, %s159
        %s161 = smul.u32 16, %s10
      $region32: #{conv_layer_forward.3} parent=27 // pred_fallthru
        _
    $region28: #{conv_layer_forward.3} parent=5 // pred_fallthru
      _
    %p162 = scmp.le.s32.totalorder 1, %s10
    %p163 = scmp.lt.s32.totalorder %s10, 5
    %p164 = pnand %p162, %p163
    %p165 = pneg %p164
    // Predicated region
    $region33: #{conv_layer_forward.3} parent=5 // pred_check
      _
    $region34: #{conv_layer_forward.3} parent=5 // pred_check_branch
      %167 = sbr.rel (%p164) target = $region36
    $region35: #{conv_layer_forward.3} parent=5 // pred_region
      %s168 = ssub.s32 %s10, 1
      %s169 = smul.u32 16, %s15
      %p170 = scmp.lt.s32.totalorder %s169, 63
      %s171 = scalar_select %p170, %s169, 63
      %s172 = smul.addr %s171, 8
      %s173 = scalar_lea.vmem %s0, %s172
      %p174 = pneg %p36
      %p175 = pneg %p33
      %p176 = pneg %p57
      %p177 = pneg %p54
      %p178 = pneg %p78
      %p179 = pneg %p75
      %p180 = pneg %p99
      %p181 = pneg %p96
      %p182 = pneg %p125
      %p183 = pneg %p122
      %s184 = smul.u32 16, %s15
      %p185 = scmp.lt.s32.totalorder %s184, 63
      %s186 = scalar_select %p185, %s184, 63
      %s187 = smul.addr %s186, 8
      %s188 = scalar_lea.vmem %s4, %s187
      %s189 = smul.u32 16, %s15
      %p190 = scmp.lt.s32.totalorder %s189, 63
      %s191 = scalar_select %p190, %s189, 63
      %s192 = smul.addr %s191, 8
      %s193 = scalar_lea.vmem %s0, %s192
      %s194 = smul.u32 16, %s15
      %s195 = smul.u32 16, %s15
      %p196 = scmp.lt.s32.totalorder %s195, 63
      %s197 = scalar_select %p196, %s195, 63
      %s198 = smul.addr %s197, 8
      %s199 = scalar_lea.vmem %s4, %s198
      %s200 = smul.u32 16, %s15
      %v201 = vld [vmem:[%s1] sm:$0x1]
      %v202 = vmul.f32 %v201, 0.001953125
      %v203 = vld [vmem:[%s1 + $0x1] sm:$0x1]
      %v204 = vmul.f32 %v203, 0.001953125
      %v205 = vmul.f32 %v202, %v202
      %v206 = vsub.f32 %v204, %v205
      %v207 = vmax.f32 %v206, 0.0
      %v208 = vadd.f32 %v207, 1e-05
      %v209 = vrsqrt.pop %v208
      %v210 = vld [vmem:[%s2] sm:$0x1]
      %v211 = vmul.f32 %v210, %v209
      %v212 = vld [vmem:[%s3] sm:$0x1]
      %v213 = vmul.f32 %v202, %v211
      %v214 = vsub.f32 %v212, %v213
      %v215 = vld [vmem:[%s193] sm:$0xff]
      %v216 = vld [vmem:[%s193 + $0x8] sm:$0xff]
      %v217 = vld [vmem:[%s193 + $0x10] sm:$0xff]
      %v218 = vld [vmem:[%s193 + $0x18] sm:$0xff]
      %v219 = vld [vmem:[%s193 + $0x20] sm:$0xff]
      %v220 = vld [vmem:[%s193 + $0x28] sm:$0xff]
      %v221 = vld [vmem:[%s193 + $0x30] sm:$0xff]
      %v222 = vld [vmem:[%s193 + $0x38] sm:$0xff]
      %v223 = vld [vmem:[%s193 + $0x40] sm:$0xff]
      %v224 = vld [vmem:[%s193 + $0x48] sm:$0xff]
      %v225 = vld [vmem:[%s193 + $0x50] sm:$0xff]
      %v226 = vld [vmem:[%s193 + $0x58] sm:$0xff]
      %v227 = vld [vmem:[%s193 + $0x60] sm:$0xff]
      %v228 = vld [vmem:[%s193 + $0x68] sm:$0xff]
      %v229 = vld [vmem:[%s193 + $0x70] sm:$0xff]
      %v230 = vld [vmem:[%s193 + $0x78] sm:$0xff]
      %v232 = vlaneseq
      %v233 = vshrl.u32 %v232, 7
      %v234 = vsub.s32 0, %v233
      %v235 = vrot.slane %v211, %v234
      %v237 = vmul.f32 %v215, %v235
      %v238 = vmul.f32 %v216, %v235
      %v239 = vmul.f32 %v217, %v235
      %v240 = vmul.f32 %v218, %v235
      %v241 = vmul.f32 %v219, %v235
      %v242 = vmul.f32 %v220, %v235
      %v243 = vmul.f32 %v221, %v235
      %v244 = vmul.f32 %v222, %v235
      %v245 = vmul.f32 %v223, %v235
      %v246 = vmul.f32 %v224, %v235
      %v247 = vmul.f32 %v225, %v235
      %v248 = vmul.f32 %v226, %v235
      %v249 = vmul.f32 %v227, %v235
      %v250 = vmul.f32 %v228, %v235
      %v251 = vmul.f32 %v229, %v235
      %v252 = vmul.f32 %v230, %v235
      %v254 = vlaneseq
      %v255 = vshrl.u32 %v254, 7
      %v256 = vsub.s32 0, %v255
      %v257 = vrot.slane %v214, %v256
      %v259 = vadd.f32 %v237, %v257
      %v260 = vadd.f32 %v238, %v257
      %v261 = vadd.f32 %v239, %v257
      %v262 = vadd.f32 %v240, %v257
      %v263 = vadd.f32 %v241, %v257
      %v264 = vadd.f32 %v242, %v257
      %v265 = vadd.f32 %v243, %v257
      %v266 = vadd.f32 %v244, %v257
      %v267 = vadd.f32 %v245, %v257
      %v268 = vadd.f32 %v246, %v257
      %v269 = vadd.f32 %v247, %v257
      %v270 = vadd.f32 %v248, %v257
      %v271 = vadd.f32 %v249, %v257
      %v272 = vadd.f32 %v250, %v257
      %v273 = vadd.f32 %v251, %v257
      %v274 = vadd.f32 %v252, %v257
      %v275 = vmax.f32 %v259, 0.0
      %v276 = vmax.f32 %v260, 0.0
      %v277 = vmax.f32 %v261, 0.0
      %v278 = vmax.f32 %v262, 0.0
      %v279 = vmax.f32 %v263, 0.0
      %v280 = vmax.f32 %v264, 0.0
      %v281 = vmax.f32 %v265, 0.0
      %v282 = vmax.f32 %v266, 0.0
      %v283 = vmax.f32 %v267, 0.0
      %v284 = vmax.f32 %v268, 0.0
      %v285 = vmax.f32 %v269, 0.0
      %v286 = vmax.f32 %v270, 0.0
      %v287 = vmax.f32 %v271, 0.0
      %v288 = vmax.f32 %v272, 0.0
      %v289 = vmax.f32 %v273, 0.0
      %v290 = vmax.f32 %v274, 0.0
      %291 = vst [vmem:[%s199] sm:$0xff] %v275
      %292 = vst [vmem:[%s199 + $0x8] sm:$0xff] %v276
      %293 = vst [vmem:[%s199 + $0x10] sm:$0xff] %v277
      %294 = vst [vmem:[%s199 + $0x18] sm:$0xff] %v278
      %295 = vst [vmem:[%s199 + $0x20] sm:$0xff] %v279
      %296 = vst [vmem:[%s199 + $0x28] sm:$0xff] %v280
      %297 = vst [vmem:[%s199 + $0x30] sm:$0xff] %v281
      %298 = vst [vmem:[%s199 + $0x38] sm:$0xff] %v282
      %299 = vst [vmem:[%s199 + $0x40] sm:$0xff] %v283
      %300 = vst [vmem:[%s199 + $0x48] sm:$0xff] %v284
      %301 = vst [vmem:[%s199 + $0x50] sm:$0xff] %v285
      %302 = vst [vmem:[%s199 + $0x58] sm:$0xff] %v286
      %303 = vst [vmem:[%s199 + $0x60] sm:$0xff] %v287
      %304 = vst [vmem:[%s199 + $0x68] sm:$0xff] %v288
      %305 = vst [vmem:[%s199 + $0x70] sm:$0xff] %v289
      %306 = vst [vmem:[%s199 + $0x78] sm:$0xff] %v290
      %s307 = smul.u32 16, %s15
      %p308 = scmp.lt.s32.totalorder %s307, 63
      %s309 = scalar_select %p308, %s307, 63
      %s310 = smul.addr %s309, 8
      %s311 = scalar_lea.vmem %s4, %s310
      // Predicated region
      $region37: #{conv_layer_forward.3} parent=35 // pred_check
        %p312 = pneg %p122
      $region38: #{conv_layer_forward.3} parent=35 // pred_check_branch
        %314 = sbr.rel (%p312) target = $region40
      $region39: #{conv_layer_forward.3} parent=35 // pred_region
        %s315 = smul.u32 16, %s15
      $region40: #{conv_layer_forward.3} parent=35 // pred_fallthru
        _
    $region36: #{conv_layer_forward.3} parent=5 // pred_fallthru
      _
    %p316 = scmp.le.s32.totalorder 2, %s10
    // Predicated region
    $region41: #{conv_layer_forward.3} parent=5 // pred_check
      %p317 = pneg %p316
    $region42: #{conv_layer_forward.3} parent=5 // pred_check_branch
      %319 = sbr.rel (%p317) target = $region44
    $region43: #{conv_layer_forward.3} parent=5 // pred_region
      %s320 = ssub.s32 %s10, 2
      // Predicated region
      $region45: #{conv_layer_forward.3} parent=43 // pred_check
        %p321 = pneg %p128
      $region46: #{conv_layer_forward.3} parent=43 // pred_check_branch
        %323 = sbr.rel (%p321) target = $region48
      $region47: #{conv_layer_forward.3} parent=43 // pred_region
        %s324 = smul.u32 16, %s16
        %p325 = scmp.lt.s32.totalorder %s324, 63
        %s326 = scalar_select %p325, %s324, 63
        %s327 = smul.addr %s326, 8
        %s328 = scalar_lea.vmem %s4, %s327
      $region48: #{conv_layer_forward.3} parent=43 // pred_fallthru
        _
    $region44: #{conv_layer_forward.3} parent=5 // pred_fallthru
      _
  $region6: #{conv_layer_forward.3} parent=0 // loop_footer
    %s14 = sadd.s32 1, %s10
  $region7: #{conv_layer_forward.3} parent=0 // loop_footer_branch
    %9 = sbr.rel target = $region3
  $region8: #{conv_layer_forward.3} parent=0 // loop_exit
    _

// kernel: conv_layer_forward.2
$region0: #{conv_layer_forward.2}
  #allocation0 [shape = 'u32[]', space=smem, size = 0x4, offset = 0x4, fixed_abs, tag = 'smem constant byte address 0x4 - core index']
  #allocation1 [shape = 'u32[144,128]{1,0:T(1,128)}', space=vmem, size = 0x12000, scoped, tag = 'internal scratch']
  %s0 = inlined_call_operand.vmem [shape: f32[512,128], index: 0, kind: input, shape index: {}]
  %s1 = inlined_call_operand.vmem [shape: f32[128,128], index: 1, kind: input, shape index: {}]
  %s2 = inlined_call_operand.vmem [shape: f32[512,128], index: 2, kind: output, shape index: {0}]
  %s3 = inlined_call_operand.vmem [shape: f32[2,2,128], index: 3, kind: output, shape index: {1}]
  %4 = xla_tuple %s2, %s3
  %s5 = sld [smem:[#allocation0]]
  $region53: #{conv_layer_forward.2} parent=0
    _
  %s7 = ssub.s32 1, %s5
  %s8 = scalar_select 0, %s7, %s5
  loop: start=0, step=1, limit=6
  $region2: #{conv_layer_forward.2} parent=0 // loop_pre_header
    _
  $region3: #{conv_layer_forward.2} parent=0 // loop_header
    %s10 = sphi 0, %s14
    %p11 = scmp.ge.s32.totalorder %s10, 6
    %s17 = sphi 0, %s29
    %s18 = sphi 0, %s25
    %s19 = sphi 0, %s17
    %s20 = sphi 0, %s18
    %s21 = sphi 0, %s19
    %s22 = sphi 0, %s20
    %s36 = sphi 0, %s38
    %s39 = sphi 0, %s36
    %s40 = sphi 0, %s39
    %s56 = sphi 0, %s40
    %s60 = sphi 0, %s60
    %s62 = sphi 0, %s60
    %s63 = sphi 0, %s62
    %s77 = sphi 0, %s63
    %s87 = sphi 0, %s89
    %s90 = sphi 0, %s87
    %s91 = sphi 0, %s90
    %s107 = sphi 0, %s91
    %s113 = sphi 0, %s115
    %s116 = sphi 0, %s113
    %s117 = sphi 0, %s116
    %s133 = sphi 0, %s117
  $region4: #{conv_layer_forward.2} parent=0 // loop_header_branch
    %13 = sbr.rel (%p11) target = $region8
  $region5: #{conv_layer_forward.2} parent=0 // loop_body
    %s15 = ssub.s32 %s10, 1
    %s16 = ssub.s32 %s10, 2
    %s23 = sadd.s32 1, %s18
    %p24 = scmp.ge.s32.totalorder %s23, 2
    %s25 = scalar_select %p24, 0, %s23
    %s26 = sadd.s32 1, %s17
    %s27 = scalar_select %p24, %s26, %s17
    %p28 = scmp.ge.s32.totalorder %s27, 2
    %s29 = scalar_select %p28, 0, %s27
    %s30 = smul.u32 %s17, 2
    %s31 = sadd.s32 %s30, %s18
    %s32 = smul.u32 %s29, 2
    %s33 = sadd.s32 %s32, %s25
    %s34 = ssub.s32 %s31, %s33
    %p35 = scmp.eq.s32.totalorder %s34, 0
    %s37 = sadd.s32 %s36, 1
    %s38 = scalar_select %p35, %s36, %s37
    %p41 = pneg %p35
    %p42 = scmp.eq.s32.totalorder %s10, 3
    %p43 = por %p41, %p42
    %p44 = scmp.ne.s32.totalorder %s36, %s39
    %p45 = scmp.eq.s32.totalorder %s10, 0
    %p46 = por %p44, %p45
    %p47 = scmp.ne.s32.totalorder %s36, %s39
    %p48 = scmp.eq.s32.totalorder %s15, 3
    %p49 = por %p47, %p48
    %p50 = scmp.ne.s32.totalorder %s39, %s40
    %p51 = scmp.eq.s32.totalorder %s15, 0
    %p52 = por %p50, %p51
    %p53 = scmp.ne.s32.totalorder %s39, %s40
    %p54 = scmp.eq.s32.totalorder %s16, 3
    %p55 = por %p53, %p54
    %p57 = scmp.ne.s32.totalorder %s40, %s56
    %p58 = scmp.eq.s32.totalorder %s16, 0
    %p59 = por %p57, %p58
    %s61 = sadd.s32 %s60, 1
    %p64 = scmp.eq.s32.totalorder %s10, 3
    %p65 = scmp.ne.s32.totalorder %s60, %s62
    %p66 = scmp.eq.s32.totalorder %s10, 0
    %p67 = por %p65, %p66
    %p68 = scmp.ne.s32.totalorder %s60, %s62
    %p69 = scmp.eq.s32.totalorder %s15, 3
    %p70 = por %p68, %p69
    %p71 = scmp.ne.s32.totalorder %s62, %s63
    %p72 = scmp.eq.s32.totalorder %s15, 0
    %p73 = por %p71, %p72
    %p74 = scmp.ne.s32.totalorder %s62, %s63
    %p75 = scmp.eq.s32.totalorder %s16, 3
    %p76 = por %p74, %p75
    %p78 = scmp.ne.s32.totalorder %s63, %s77
    %p79 = scmp.eq.s32.totalorder %s16, 0
    %p80 = por %p78, %p79
    %s81 = smul.u32 %s17, 2
    %s82 = sadd.s32 %s81, %s18
    %s83 = smul.u32 %s29, 2
    %s84 = sadd.s32 %s83, %s25
    %s85 = ssub.s32 %s82, %s84
    %p86 = scmp.eq.s32.totalorder %s85, 0
    %s88 = sadd.s32 %s87, 1
    %s89 = scalar_select %p86, %s87, %s88
    %p92 = pneg %p86
    %p93 = scmp.eq.s32.totalorder %s10, 3
    %p94 = por %p92, %p93
    %p95 = scmp.ne.s32.totalorder %s87, %s90
    %p96 = scmp.eq.s32.totalorder %s10, 0
    %p97 = por %p95, %p96
    %p98 = scmp.ne.s32.totalorder %s87, %s90
    %p99 = scmp.eq.s32.totalorder %s15, 3
    %p100 = por %p98, %p99
    %p101 = scmp.ne.s32.totalorder %s90, %s91
    %p102 = scmp.eq.s32.totalorder %s15, 0
    %p103 = por %p101, %p102
    %p104 = scmp.ne.s32.totalorder %s90, %s91
    %p105 = scmp.eq.s32.totalorder %s16, 3
    %p106 = por %p104, %p105
    %p108 = scmp.ne.s32.totalorder %s91, %s107
    %p109 = scmp.eq.s32.totalorder %s16, 0
    %p110 = por %p108, %p109
    %s111 = ssub.s32 %s17, %s29
    %p112 = scmp.eq.s32.totalorder %s111, 0
    %s114 = sadd.s32 %s113, 1
    %s115 = scalar_select %p112, %s113, %s114
    %p118 = pneg %p112
    %p119 = scmp.eq.s32.totalorder %s10, 3
    %p120 = por %p118, %p119
    %p121 = scmp.ne.s32.totalorder %s113, %s116
    %p122 = scmp.eq.s32.totalorder %s10, 0
    %p123 = por %p121, %p122
    %p124 = scmp.ne.s32.totalorder %s113, %s116
    %p125 = scmp.eq.s32.totalorder %s15, 3
    %p126 = por %p124, %p125
    %p127 = scmp.ne.s32.totalorder %s116, %s117
    %p128 = scmp.eq.s32.totalorder %s15, 0
    %p129 = por %p127, %p128
    %p130 = scmp.ne.s32.totalorder %s116, %s117
    %p131 = scmp.eq.s32.totalorder %s16, 3
    %p132 = por %p130, %p131
    %p134 = scmp.ne.s32.totalorder %s117, %s133
    %p135 = scmp.eq.s32.totalorder %s16, 0
    %p136 = por %p134, %p135
    %p137 = scmp.le.s32.totalorder 1, %s10
    %p138 = scmp.lt.s32.totalorder %s10, 5
    %p139 = pnand %p137, %p138
    %p140 = pneg %p139
    // Predicated region
    $region9: #{conv_layer_forward.2} parent=5 // pred_check
      _
    $region10: #{conv_layer_forward.2} parent=5 // pred_check_branch
      %142 = sbr.rel (%p139) target = $region12
    $region11: #{conv_layer_forward.2} parent=5 // pred_region
      %s143 = ssub.s32 %s10, 1
      // Predicated region
      $region13: #{conv_layer_forward.2} parent=11 // pred_check
        %p144 = pneg %p73
      $region14: #{conv_layer_forward.2} parent=11 // pred_check_branch
        %146 = sbr.rel (%p144) target = $region16
      $region15: #{conv_layer_forward.2} parent=11 // pred_region
        _
      $region16: #{conv_layer_forward.2} parent=11 // pred_fallthru
        _
    $region12: #{conv_layer_forward.2} parent=5 // pred_fallthru
      _
    %p147 = scmp.lt.s32.totalorder %s10, 4
    // Predicated region
    $region17: #{conv_layer_forward.2} parent=5 // pred_check
      %p148 = pneg %p147
    $region18: #{conv_layer_forward.2} parent=5 // pred_check_branch
      %150 = sbr.rel (%p148) target = $region20
    $region19: #{conv_layer_forward.2} parent=5 // pred_region
      // Predicated region
      $region21: #{conv_layer_forward.2} parent=19 // pred_check
        %p151 = pneg %p46
      $region22: #{conv_layer_forward.2} parent=19 // pred_check_branch
        %153 = sbr.rel (%p151) target = $region24
      $region23: #{conv_layer_forward.2} parent=19 // pred_region
        %s154 = smul.u32 %s17, 2
        %s155 = sadd.s32 %s154, %s18
        %s156 = smul.u32 16, %s155
        %p157 = scmp.lt.s32.totalorder %s156, 63
        %s158 = scalar_select %p157, %s156, 63
        %s159 = smul.addr %s158, 8
        %s160 = scalar_lea.vmem %s0, %s159
        %s161 = smul.u32 %s17, 2
        %s162 = sadd.s32 %s161, %s18
        %s163 = smul.u32 16, %s162
      $region24: #{conv_layer_forward.2} parent=19 // pred_fallthru
        _
    $region20: #{conv_layer_forward.2} parent=5 // pred_fallthru
      _
    %p164 = scmp.le.s32.totalorder 1, %s10
    %p165 = scmp.lt.s32.totalorder %s10, 5
    %p166 = pnand %p164, %p165
    %p167 = pneg %p166
    // Predicated region
    $region25: #{conv_layer_forward.2} parent=5 // pred_check
      _
    $region26: #{conv_layer_forward.2} parent=5 // pred_check_branch
      %169 = sbr.rel (%p166) target = $region28
    $region27: #{conv_layer_forward.2} parent=5 // pred_region
      %s170 = ssub.s32 %s10, 1
      %s171 = smul.u32 %s19, 2
      %s172 = sadd.s32 %s171, %s20
      %s173 = smul.u32 16, %s172
      %p174 = scmp.lt.s32.totalorder %s173, 63
      %s175 = scalar_select %p174, %s173, 63
      %s176 = smul.addr %s175, 8
      %s177 = scalar_lea.vmem %s0, %s176
      %p178 = pneg %p52
      %p179 = pneg %p49
      %p180 = pneg %p73
      %p181 = pneg %p70
      %p182 = pneg %p103
      %p183 = pneg %p100
      %s184 = smul.u32 %s19, 2
      %s185 = sadd.s32 %s184, %s20
      %s186 = smul.u32 16, %s185
      %p187 = scmp.lt.s32.totalorder %s186, 63
      %s188 = scalar_select %p187, %s186, 63
      %s189 = smul.addr %s188, 8
      %s190 = scalar_lea.vmem %s2, %s189
      %p191 = pneg %p129
      %p192 = pneg %p126
      %p193 = scmp.lt.s32.totalorder %s19, 1
      %s194 = scalar_select %p193, %s19, 1
      %s195 = smul.addr %s194, 2
      %s196 = scalar_lea.vmem %s3, %s195
      %s197 = smul.u32 %s19, 2
      %s198 = sadd.s32 %s197, %s20
      %s199 = smul.u32 16, %s198
      %p200 = scmp.lt.s32.totalorder %s199, 63
      %s201 = scalar_select %p200, %s199, 63
      %s202 = smul.addr %s201, 8
      %s203 = scalar_lea.vmem %s0, %s202
      %s204 = smul.u32 %s19, 2
      %s205 = sadd.s32 %s204, %s20
      %s206 = smul.u32 16, %s205
      %s207 = smul.u32 %s19, 2
      %s208 = sadd.s32 %s207, %s20
      %s209 = smul.u32 16, %s208
      %p210 = scmp.lt.s32.totalorder %s209, 63
      %s211 = scalar_select %p210, %s209, 63
      %s212 = smul.addr %s211, 8
      %s213 = scalar_lea.vmem %s2, %s212
      %s214 = smul.u32 %s19, 2
      %s215 = sadd.s32 %s214, %s20
      %s216 = smul.u32 16, %s215
      %p217 = scmp.lt.s32.totalorder %s19, 1
      %s218 = scalar_select %p217, %s19, 1
      %s219 = smul.addr %s218, 2
      %s220 = scalar_lea.vmem %s3, %s219
      %p221 = scmp.eq.s32.totalorder %s20, 0
      // Predicated region
      $region29: #{conv_layer_forward.2} parent=27 // pred_check
        %p222 = pneg %p221
      $region30: #{conv_layer_forward.2} parent=27 // pred_check_branch
        %224 = sbr.rel (%p222) target = $region32
      $region31: #{conv_layer_forward.2} parent=27 // pred_region
        %225 = vst [vmem:[%s220] sm:$0x3] 0.0
      $region32: #{conv_layer_forward.2} parent=27 // pred_fallthru
        _
      %v226 = vld [vmem:[%s203] sm:$0xff]
      %v227 = vld [vmem:[%s203 + $0x8] sm:$0xff]
      %v228 = vld [vmem:[%s203 + $0x10] sm:$0xff]
      %v229 = vld [vmem:[%s203 + $0x18] sm:$0xff]
      %v230 = vld [vmem:[%s203 + $0x20] sm:$0xff]
      %v231 = vld [vmem:[%s203 + $0x28] sm:$0xff]
      %v232 = vld [vmem:[%s203 + $0x30] sm:$0xff]
      %v233 = vld [vmem:[%s203 + $0x38] sm:$0xff]
      %v234 = vld [vmem:[%s203 + $0x40] sm:$0xff]
      %v235 = vld [vmem:[%s203 + $0x48] sm:$0xff]
      %v236 = vld [vmem:[%s203 + $0x50] sm:$0xff]
      %v237 = vld [vmem:[%s203 + $0x58] sm:$0xff]
      %v238 = vld [vmem:[%s203 + $0x60] sm:$0xff]
      %v239 = vld [vmem:[%s203 + $0x68] sm:$0xff]
      %v240 = vld [vmem:[%s203 + $0x70] sm:$0xff]
      %v241 = vld [vmem:[%s203 + $0x78] sm:$0xff]
      %v242 = vld [vmem:[%s1] sm:$0xff]
      %v243 = vld [vmem:[%s1 + $0x8] sm:$0xff]
      %v244 = vld [vmem:[%s1 + $0x10] sm:$0xff]
      %v245 = vld [vmem:[%s1 + $0x18] sm:$0xff]
      %v246 = vld [vmem:[%s1 + $0x20] sm:$0xff]
      %v247 = vld [vmem:[%s1 + $0x28] sm:$0xff]
      %v248 = vld [vmem:[%s1 + $0x30] sm:$0xff]
      %v249 = vld [vmem:[%s1 + $0x38] sm:$0xff]
      %v250 = vld [vmem:[%s1 + $0x40] sm:$0xff]
      %v251 = vld [vmem:[%s1 + $0x48] sm:$0xff]
      %v252 = vld [vmem:[%s1 + $0x50] sm:$0xff]
      %v253 = vld [vmem:[%s1 + $0x58] sm:$0xff]
      %v254 = vld [vmem:[%s1 + $0x60] sm:$0xff]
      %v255 = vld [vmem:[%s1 + $0x68] sm:$0xff]
      %v256 = vld [vmem:[%s1 + $0x70] sm:$0xff]
      %v257 = vld [vmem:[%s1 + $0x78] sm:$0xff]
      %258 = vmatprep.subr.mxu0 0.0
      %259 = vmatpush1.msra.mxu0 %v242
      %260 = vmatprep.subr.mxu0 0.0
      %261 = vmatpush1.msra.mxu0 %v243
      %262 = vmatprep.subr.mxu0 0.0
      %263 = vmatpush1.msra.mxu0 %v244
      %264 = vmatprep.subr.mxu0 0.0
      %265 = vmatpush1.msra.mxu0 %v245
      %266 = vmatprep.subr.mxu0 0.0
      %267 = vmatpush1.msra.mxu0 %v246
      %268 = vmatprep.subr.mxu0 0.0
      %269 = vmatpush1.msra.mxu0 %v247
      %270 = vmatprep.subr.mxu0 0.0
      %271 = vmatpush1.msra.mxu0 %v248
      %272 = vmatprep.subr.mxu0 0.0
      %273 = vmatpush1.msra.mxu0 %v249
      %274 = vmatprep.subr.mxu0 0.0
      %275 = vmatpush1.msra.mxu0 %v250
      %276 = vmatprep.subr.mxu0 0.0
      %277 = vmatpush1.msra.mxu0 %v251
      %278 = vmatprep.subr.mxu0 0.0
      %279 = vmatpush1.msra.mxu0 %v252
      %280 = vmatprep.subr.mxu0 0.0
      %281 = vmatpush1.msra.mxu0 %v253
      %282 = vmatprep.subr.mxu0 0.0
      %283 = vmatpush1.msra.mxu0 %v254
      %284 = vmatprep.subr.mxu0 0.0
      %285 = vmatpush1.msra.mxu0 %v255
      %286 = vmatprep.subr.mxu0 0.0
      %287 = vmatpush1.msra.mxu0 %v256
      %288 = vmatprep.subr.mxu0 0.0
      %289 = vmatpush1.msra.mxu0 %v257
      %290 = vmatprep.subr.mxu0 0.0
      %291 = vmatpush1.msra.mxu0 0.0
      %292 = vmatprep.subr.mxu0 0.0
      %293 = vmatpush1.msra.mxu0 0.0
      %294 = vmatprep.subr.mxu0 0.0
      %295 = vmatpush1.msra.mxu0 0.0
      %296 = vmatprep.subr.mxu0 0.0
      %297 = vmatpush1.msra.mxu0 0.0
      %298 = vmatprep.subr.mxu0 0.0
      %299 = vmatpush1.msra.mxu0 0.0
      %300 = vmatprep.subr.mxu0 0.0
      %301 = vmatpush1.msra.mxu0 0.0
      %302 = vmatprep.subr.mxu0 0.0
      %303 = vmatpush1.msra.mxu0 0.0
      %304 = vmatprep.subr.mxu0 0.0
      %305 = vmatpush1.msra.mxu0 0.0
      %306 = vmatprep.subr.mxu0 0.0
      %307 = vmatpush1.msra.mxu0 0.0
      %308 = vmatprep.subr.mxu0 0.0
      %309 = vmatpush1.msra.mxu0 0.0
      %310 = vmatprep.subr.mxu0 0.0
      %311 = vmatpush1.msra.mxu0 0.0
      %312 = vmatprep.subr.mxu0 0.0
      %313 = vmatpush1.msra.mxu0 0.0
      %314 = vmatprep.subr.mxu0 0.0
      %315 = vmatpush1.msra.mxu0 0.0
      %316 = vmatprep.subr.mxu0 0.0
      %317 = vmatpush1.msra.mxu0 0.0
      %318 = vmatprep.subr.mxu0 0.0
      %319 = vmatpush1.msra.mxu0 0.0
      %320 = vmatprep.subr.mxu0 0.0
      %321 = vmatpush1.msra.mxu0 0.0
      %322 = vmatprep.mubr.f32.mxu0 0.0
      %323 = vmatmul.mubr.f32.gmra.mrb[0].mxu0 %v226
      %v324 = vpop.f32.mrb[0].mxu0
      %v325 = vadd.f32 0.0, %v324
      %v326 = vpop.f32.mrb[0].mxu0
      %327 = vmatprep.mubr.f32.mxu0 0.0
      %328 = vmatmul.mubr.f32.gmra.mrb[0].mxu0 %v227
      %v329 = vpop.f32.mrb[0].mxu0
      %v330 = vadd.f32 0.0, %v329
      %v331 = vpop.f32.mrb[0].mxu0
      %332 = vmatprep.mubr.f32.mxu0 0.0
      %333 = vmatmul.mubr.f32.gmra.mrb[0].mxu0 %v228
      %v334 = vpop.f32.mrb[0].mxu0
      %v335 = vadd.f32 0.0, %v334
      %v336 = vpop.f32.mrb[0].mxu0
      %337 = vmatprep.mubr.f32.mxu0 0.0
      %338 = vmatmul.mubr.f32.gmra.mrb[0].mxu0 %v229
      %v339 = vpop.f32.mrb[0].mxu0
      %v340 = vadd.f32 0.0, %v339
      %v341 = vpop.f32.mrb[0].mxu0
      %342 = vmatprep.mubr.f32.mxu0 0.0
      %343 = vmatmul.mubr.f32.gmra.mrb[0].mxu0 %v230
      %v344 = vpop.f32.mrb[0].mxu0
      %v345 = vadd.f32 0.0, %v344
      %v346 = vpop.f32.mrb[0].mxu0
      %347 = vmatprep.mubr.f32.mxu0 0.0
      %348 = vmatmul.mubr.f32.gmra.mrb[0].mxu0 %v231
      %v349 = vpop.f32.mrb[0].mxu0
      %v350 = vadd.f32 0.0, %v349
      %v351 = vpop.f32.mrb[0].mxu0
      %352 = vmatprep.mubr.f32.mxu0 0.0
      %353 = vmatmul.mubr.f32.gmra.mrb[0].mxu0 %v232
      %v354 = vpop.f32.mrb[0].mxu0
      %v355 = vadd.f32 0.0, %v354
      %v356 = vpop.f32.mrb[0].mxu0
      %357 = vmatprep.mubr.f32.mxu0 0.0
      %358 = vmatmul.mubr.f32.gmra.mrb[0].mxu0 %v233
      %v359 = vpop.f32.mrb[0].mxu0
      %v360 = vadd.f32 0.0, %v359
      %v361 = vpop.f32.mrb[0].mxu0
      %362 = vmatprep.mubr.f32.mxu0 0.0
      %363 = vmatmul.mubr.f32.gmra.mrb[0].mxu0 %v234
      %v364 = vpop.f32.mrb[0].mxu0
      %v365 = vadd.f32 0.0, %v364
      %v366 = vpop.f32.mrb[0].mxu0
      %367 = vmatprep.mubr.f32.mxu0 0.0
      %368 = vmatmul.mubr.f32.gmra.mrb[0].mxu0 %v235
      %v369 = vpop.f32.mrb[0].mxu0
      %v370 = vadd.f32 0.0, %v369
      %v371 = vpop.f32.mrb[0].mxu0
      %372 = vmatprep.mubr.f32.mxu0 0.0
      %373 = vmatmul.mubr.f32.gmra.mrb[0].mxu0 %v236
      %v374 = vpop.f32.mrb[0].mxu0
      %v375 = vadd.f32 0.0, %v374
      %v376 = vpop.f32.mrb[0].mxu0
      %377 = vmatprep.mubr.f32.mxu0 0.0
      %378 = vmatmul.mubr.f32.gmra.mrb[0].mxu0 %v237
      %v379 = vpop.f32.mrb[0].mxu0
      %v380 = vadd.f32 0.0, %v379
      %v381 = vpop.f32.mrb[0].mxu0
      %382 = vmatprep.mubr.f32.mxu0 0.0
      %383 = vmatmul.mubr.f32.gmra.mrb[0].mxu0 %v238
      %v384 = vpop.f32.mrb[0].mxu0
      %v385 = vadd.f32 0.0, %v384
      %v386 = vpop.f32.mrb[0].mxu0
      %387 = vmatprep.mubr.f32.mxu0 0.0
      %388 = vmatmul.mubr.f32.gmra.mrb[0].mxu0 %v239
      %v389 = vpop.f32.mrb[0].mxu0
      %v390 = vadd.f32 0.0, %v389
      %v391 = vpop.f32.mrb[0].mxu0
      %392 = vmatprep.mubr.f32.mxu0 0.0
      %393 = vmatmul.mubr.f32.gmra.mrb[0].mxu0 %v240
      %v394 = vpop.f32.mrb[0].mxu0
      %v395 = vadd.f32 0.0, %v394
      %v396 = vpop.f32.mrb[0].mxu0
      %397 = vmatprep.mubr.f32.mxu0 0.0
      %398 = vmatmul.mubr.f32.gmra.mrb[0].mxu0 %v241
      %v399 = vpop.f32.mrb[0].mxu0
      %v400 = vadd.f32 0.0, %v399
      %v401 = vpop.f32.mrb[0].mxu0
      %402 = vdwg.mxu0
      %403 = vst [vmem:[%s213] sm:$0xff] %v325
      %404 = vst [vmem:[%s213 + $0x8] sm:$0xff] %v330
      %405 = vst [vmem:[%s213 + $0x10] sm:$0xff] %v335
      %406 = vst [vmem:[%s213 + $0x18] sm:$0xff] %v340
      %407 = vst [vmem:[%s213 + $0x20] sm:$0xff] %v345
      %408 = vst [vmem:[%s213 + $0x28] sm:$0xff] %v350
      %409 = vst [vmem:[%s213 + $0x30] sm:$0xff] %v355
      %410 = vst [vmem:[%s213 + $0x38] sm:$0xff] %v360
      %411 = vst [vmem:[%s213 + $0x40] sm:$0xff] %v365
      %412 = vst [vmem:[%s213 + $0x48] sm:$0xff] %v370
      %413 = vst [vmem:[%s213 + $0x50] sm:$0xff] %v375
      %414 = vst [vmem:[%s213 + $0x58] sm:$0xff] %v380
      %415 = vst [vmem:[%s213 + $0x60] sm:$0xff] %v385
      %416 = vst [vmem:[%s213 + $0x68] sm:$0xff] %v390
      %417 = vst [vmem:[%s213 + $0x70] sm:$0xff] %v395
      %418 = vst [vmem:[%s213 + $0x78] sm:$0xff] %v400
      %v419 = vadd.f32 %v325, %v330
      %v420 = vadd.f32 %v419, %v335
      %v421 = vadd.f32 %v420, %v340
      %v422 = vadd.f32 %v421, %v345
      %v423 = vadd.f32 %v422, %v350
      %v424 = vadd.f32 %v423, %v355
      %v425 = vadd.f32 %v424, %v360
      %v426 = vadd.f32 %v425, %v365
      %v427 = vadd.f32 %v426, %v370
      %v428 = vadd.f32 %v427, %v375
      %v429 = vadd.f32 %v428, %v380
      %v430 = vadd.f32 %v429, %v385
      %v431 = vadd.f32 %v430, %v390
      %v432 = vadd.f32 %v431, %v395
      %v433 = vadd.f32 %v432, %v400
      %v434 = vrot.slane %v433, 4
      %v435 = vadd.f32 %v433, %v434
      %v436 = vrot.slane %v435, 2
      %v437 = vadd.f32 %v435, %v436
      %v438 = vrot.slane %v437, 1
      %v439 = vadd.f32 %v437, %v438
      %v440 = vmul.f32 %v325, %v325
      %v441 = vmul.f32 %v330, %v330
      %v442 = vmul.f32 %v335, %v335
      %v443 = vmul.f32 %v340, %v340
      %v444 = vmul.f32 %v345, %v345
      %v445 = vmul.f32 %v350, %v350
      %v446 = vmul.f32 %v355, %v355
      %v447 = vmul.f32 %v360, %v360
      %v448 = vmul.f32 %v365, %v365
      %v449 = vmul.f32 %v370, %v370
      %v450 = vmul.f32 %v375, %v375
      %v451 = vmul.f32 %v380, %v380
      %v452 = vmul.f32 %v385, %v385
      %v453 = vmul.f32 %v390, %v390
      %v454 = vmul.f32 %v395, %v395
      %v455 = vmul.f32 %v400, %v400
      %v456 = vadd.f32 %v440, %v441
      %v457 = vadd.f32 %v456, %v442
      %v458 = vadd.f32 %v457, %v443
      %v459 = vadd.f32 %v458, %v444
      %v460 = vadd.f32 %v459, %v445
      %v461 = vadd.f32 %v460, %v446
      %v462 = vadd.f32 %v461, %v447
      %v463 = vadd.f32 %v462, %v448
      %v464 = vadd.f32 %v463, %v449
      %v465 = vadd.f32 %v464, %v450
      %v466 = vadd.f32 %v465, %v451
      %v467 = vadd.f32 %v466, %v452
      %v468 = vadd.f32 %v467, %v453
      %v469 = vadd.f32 %v468, %v454
      %v470 = vadd.f32 %v469, %v455
      %v471 = vrot.slane %v470, 4
      %v472 = vadd.f32 %v470, %v471
      %v473 = vrot.slane %v472, 2
      %v474 = vadd.f32 %v472, %v473
      %v475 = vrot.slane %v474, 1
      %v476 = vadd.f32 %v474, %v475
      %v477 = vld [vmem:[%s220] sm:$0x3]
      %vm478 = vcmask 1040384
      %v479 = vsel %vm478, %v439, %v476
      %v480 = vadd.f32 %v477, %v479
      %481 = vst [vmem:[%s220] sm:$0x3] %v480
      %s482 = smul.u32 %s19, 2
      %s483 = sadd.s32 %s482, %s20
      %s484 = smul.u32 16, %s483
      %p485 = scmp.lt.s32.totalorder %s484, 63
      %s486 = scalar_select %p485, %s484, 63
      %s487 = smul.addr %s486, 8
      %s488 = scalar_lea.vmem %s2, %s487
      %p489 = scmp.lt.s32.totalorder %s19, 1
      %s490 = scalar_select %p489, %s19, 1
      %s491 = smul.addr %s490, 2
      %s492 = scalar_lea.vmem %s3, %s491
      // Predicated region
      $region33: #{conv_layer_forward.2} parent=27 // pred_check
        %p493 = pneg %p100
      $region34: #{conv_layer_forward.2} parent=27 // pred_check_branch
        %495 = sbr.rel (%p493) target = $region36
      $region35: #{conv_layer_forward.2} parent=27 // pred_region
        %s496 = smul.u32 %s19, 2
        %s497 = sadd.s32 %s496, %s20
        %s498 = smul.u32 16, %s497
      $region36: #{conv_layer_forward.2} parent=27 // pred_fallthru
        _
      // Predicated region
      $region37: #{conv_layer_forward.2} parent=27 // pred_check
        %p499 = pneg %p126
      $region38: #{conv_layer_forward.2} parent=27 // pred_check_branch
        %501 = sbr.rel (%p499) target = $region40
      $region39: #{conv_layer_forward.2} parent=27 // pred_region
        _
      $region40: #{conv_layer_forward.2} parent=27 // pred_fallthru
        _
    $region28: #{conv_layer_forward.2} parent=5 // pred_fallthru
      _
    %p502 = scmp.le.s32.totalorder 2, %s10
    // Predicated region
    $region41: #{conv_layer_forward.2} parent=5 // pred_check
      %p503 = pneg %p502
    $region42: #{conv_layer_forward.2} parent=5 // pred_check_branch
      %505 = sbr.rel (%p503) target = $region44
    $region43: #{conv_layer_forward.2} parent=5 // pred_region
      %s506 = ssub.s32 %s10, 2
      // Predicated region
      $region45: #{conv_layer_forward.2} parent=43 // pred_check
        %p507 = pneg %p106
      $region46: #{conv_layer_forward.2} parent=43 // pred_check_branch
        %509 = sbr.rel (%p507) target = $region48
      $region47: #{conv_layer_forward.2} parent=43 // pred_region
        %s510 = smul.u32 %s21, 2
        %s511 = sadd.s32 %s510, %s22
        %s512 = smul.u32 16, %s511
        %p513 = scmp.lt.s32.totalorder %s512, 63
        %s514 = scalar_select %p513, %s512, 63
        %s515 = smul.addr %s514, 8
        %s516 = scalar_lea.vmem %s2, %s515
      $region48: #{conv_layer_forward.2} parent=43 // pred_fallthru
        _
      // Predicated region
      $region49: #{conv_layer_forward.2} parent=43 // pred_check
        %p517 = pneg %p132
      $region50: #{conv_layer_forward.2} parent=43 // pred_check_branch
        %519 = sbr.rel (%p517) target = $region52
      $region51: #{conv_layer_forward.2} parent=43 // pred_region
        %p520 = scmp.lt.s32.totalorder %s21, 1
        %s521 = scalar_select %p520, %s21, 1
        %s522 = smul.addr %s521, 2
        %s523 = scalar_lea.vmem %s3, %s522
      $region52: #{conv_layer_forward.2} parent=43 // pred_fallthru
        _
    $region44: #{conv_layer_forward.2} parent=5 // pred_fallthru
      _
  $region6: #{conv_layer_forward.2} parent=0 // loop_footer
    %s14 = sadd.s32 1, %s10
  $region7: #{conv_layer_forward.2} parent=0 // loop_footer_branch
    %9 = sbr.rel target = $region3
  $region8: #{conv_layer_forward.2} parent=0 // loop_exit
    _

</llo_original>
